<compile_context>
chip_gen: v7x
topology: tpu7x:2x2x1
jax: 0.10.0
libtpu: 0.0.40
codegen_flags: <defaults>
</compile_context>

<pallas_src>
import functools

import jax
import jax.numpy as jnp
from jax.experimental import pallas as pl
from jax.experimental.pallas import tpu as pltpu


def _head_kernel(x_ref, w_ref, b_ref, out_ref):
    """Fused cls+reg 1x1 conv for one batch element.

    x_ref   : (Cin, M)        flattened pixels of all levels (channels-first)
    w_ref   : (Cout_tot, Cin) fused [cls; reg] weights
    b_ref   : (Cout_tot, 1)   fused bias
    out_ref : (Cout_tot, M)   fused output (cls rows first, then reg rows)
    """
    out_ref[...] = (
        jnp.dot(w_ref[...], x_ref[...], preferred_element_type=jnp.float32)
        + b_ref[...]
    )


def _fused_head_call(x_cat, w_fused, b_fused):
    """x_cat: (N, Cin, M). Returns (N, Cout_tot, M)."""
    N, Cin, M = x_cat.shape
    Cout = w_fused.shape[0]
    return pl.pallas_call(
        _head_kernel,
        out_shape=jax.ShapeDtypeStruct((N, Cout, M), jnp.float32),
        grid_spec=pltpu.PrefetchScalarGridSpec(
            num_scalar_prefetch=0,
            grid=(N,),
            in_specs=[
                # batch dim squeezed; full (Cin, M) block per step (tiny VMEM).
                pl.BlockSpec((None, Cin, M), lambda n: (n, 0, 0)),
                # weights / bias resident across the whole grid.
                pl.BlockSpec((Cout, Cin), lambda n: (0, 0)),
                pl.BlockSpec((Cout, 1), lambda n: (0, 0)),
            ],
            out_specs=pl.BlockSpec((None, Cout, M), lambda n: (n, 0, 0)),
        ),
        compiler_params=pltpu.CompilerParams(
            # Work per batch element is sub-microsecond: keep it sequential on
            # one TensorCore instead of sharding across v7x megacore.
            dimension_semantics=("arbitrary",),
            vmem_limit_bytes=8 * 1024 * 1024,
        ),
    )(x_cat, w_fused, b_fused)


@functools.partial(jax.jit, static_argnames=("level_shapes", "ccls"))
def _forward_fused(feats, w_fused, b_fused, level_shapes, ccls):
    """Run the whole multi-level head with a single pallas_call."""
    N = feats[0].shape[0]
    Cin = feats[0].shape[1]
    # NCHW -> (N, Cin, H*W) per level, concatenated along the pixel axis.
    x_cat = jnp.concatenate([f.reshape(N, Cin, -1) for f in feats], axis=-1)
    out = _fused_head_call(x_cat, w_fused, b_fused)  # (N, Cout_tot, M_total)

    cls_scores, bbox_preds = [], []
    off = 0
    for (H, W) in level_shapes:
        hw = H * W
        blk = out[:, :, off:off + hw]
        cls_scores.append(blk[:, :ccls, :].reshape(N, ccls, H, W))
        bbox_preds.append(blk[:, ccls:, :].reshape(N, -1, H, W))
        off += hw
    return tuple(cls_scores), tuple(bbox_preds)


class AnchorHeadPallas:
    """JAX/Pallas re-implementation of AnchorHead's forward pass."""

    def __init__(self, num_classes, use_sigmoid, input_channel,
                 feat_channels=256, anchor_scales=(8,), anchor_ratios=(1.0,),
                 strides=(8, 16, 32), seed=0):
        self.in_channels = input_channel
        self.num_classes = num_classes
        self.feat_channels = feat_channels
        self.anchor_scales = list(anchor_scales)
        self.anchor_ratios = list(anchor_ratios)
        self.anchor_strides = list(strides)
        self.use_sigmoid_cls = use_sigmoid
        self.cls_out_channels = num_classes if use_sigmoid else num_classes + 1
        if self.cls_out_channels <= 0:
            raise ValueError("num_classes={} is too small".format(num_classes))
        self.num_anchors = len(self.anchor_ratios) * len(self.anchor_scales)

        # Deterministic parameter init mirroring init_weights():
        # normal_init(conv, std=0.01) -> weight ~ N(0, 0.01), bias = 0.
        # PyTorch conv weight shape is (Cout, Cin, 1, 1); squeezed (Cout, Cin)
        # is exactly the layout the kernel wants (out = W @ X).
        cls_out = self.num_anchors * self.cls_out_channels
        reg_out = self.num_anchors * 4
        k = jax.random.PRNGKey(seed)
        k_wc, k_wr = jax.random.split(k)
        w_cls = 0.01 * jax.random.normal(k_wc, (cls_out, self.in_channels),
                                         dtype=jnp.float32)
        w_reg = 0.01 * jax.random.normal(k_wr, (reg_out, self.in_channels),
                                         dtype=jnp.float32)
        self.ccls = cls_out
        self.creg = reg_out
        self.w_fused = jnp.concatenate([w_cls, w_reg], axis=0)      # (Ctot, Cin)
        self.b_fused = jnp.zeros((cls_out + reg_out, 1), jnp.float32)

    def forward(self, feats):
        """feats: list of NCHW arrays -> (list of cls_scores, list of bbox_preds),
        matching multi_apply(self.forward_single, feats)."""
        feats = list(feats)
        level_shapes = tuple((int(f.shape[2]), int(f.shape[3])) for f in feats)
        cls_scores, bbox_preds = _forward_fused(
            feats, self.w_fused, self.b_fused,
            level_shapes=level_shapes, ccls=self.ccls)
        return list(cls_scores), list(bbox_preds)

    def forward_single(self, x):
        """x: (N, Cin, H, W) NCHW -> (cls_score, bbox_pred) both NCHW."""
        cls_scores, bbox_preds = self.forward([x])
        return cls_scores[0], bbox_preds[0]

    # TODO(synk): get_anchors / AnchorGenerator are host-side integer box
    # enumeration (no tensor hot path); not implemented as a Pallas kernel.


def _reference_forward_single(head, x):
    """Pure-JAX reference of the two 1x1 convs for correctness checking."""
    N, Cin, H, W = x.shape
    xf = x.reshape(N, Cin, H * W)
    w_cls = head.w_fused[:head.ccls]
    w_reg = head.w_fused[head.ccls:]
    b_cls = head.b_fused[:head.ccls].reshape(1, -1, 1, 1)
    b_reg = head.b_fused[head.ccls:].reshape(1, -1, 1, 1)
    cls = jnp.einsum("oc,ncm->nom", w_cls, xf).reshape(N, -1, H, W) + b_cls
    reg = jnp.einsum("oc,ncm->nom", w_reg, xf).reshape(N, -1, H, W) + b_reg
    return cls, reg


if __name__ == "__main__":
    key = jax.random.PRNGKey(0)
    batch = 2
    in_channels = 32
    num_classes = 4

    head = AnchorHeadPallas(
        num_classes=num_classes,
        use_sigmoid=True,
        input_channel=in_channels,
        feat_channels=32,
        strides=(8, 16, 32),
        seed=0,
    )

    # Multi-level feature maps (NCHW), e.g. a 128x128 image at strides 8/16/32.
    spatial = [16, 8, 4]
    keys = jax.random.split(key, len(spatial))
    feats = [
        jax.random.normal(k, (batch, in_channels, s, s), dtype=jnp.float32)
        for k, s in zip(keys, spatial)
    ]

    cls_scores, bbox_preds = head.forward(feats)
    jax.block_until_ready(cls_scores)
    jax.block_until_ready(bbox_preds)

    # Sanity check against the pure-JAX reference.
    for x, cs, bp in zip(feats, cls_scores, bbox_preds):
        ref_cs, ref_bp = _reference_forward_single(head, x)
        assert cs.shape == ref_cs.shape and bp.shape == ref_bp.shape
        assert jnp.allclose(cs, ref_cs, atol=1e-4, rtol=1e-4)
        assert jnp.allclose(bp, ref_bp, atol=1e-4, rtol=1e-4)

    print("KERNEL_OK")
</pallas_src>

<mosaic_0001>
module attributes {stable_mosaic.version = 11 : i64} {
  func.func @_head_kernel(%arg0: i32, %arg1: memref<1x32x336xf32, #tpu.memory_space<vmem>>, %arg2: memref<8x32xf32, #tpu.memory_space<vmem>>, %arg3: memref<8x1xf32, #tpu.memory_space<vmem>>, %arg4: memref<1x8x336xf32, #tpu.memory_space<vmem>>) attributes {dimension_semantics = [#tpu.dimension_semantics<arbitrary>], iteration_bounds = array<i64: 2>, scalar_prefetch = 0 : i64, scratch_operands = 0 : i64, tpu.core_type = #tpu.core_type<tc>, window_params = [{transform_indices = @transform_0, window_bounds = array<i64: 1, 32, 336>}, {pipeline_mode = #tpu.pipeline_mode<synchronous>, transform_indices = @transform_1, window_bounds = array<i64: 8, 32>}, {pipeline_mode = #tpu.pipeline_mode<synchronous>, transform_indices = @transform_2, window_bounds = array<i64: 8, 1>}, {transform_indices = @transform_3, window_bounds = array<i64: 1, 8, 336>}]} {
    %c0 = arith.constant 0 : index
    %c0_0 = arith.constant 0 : index
    %0 = vector.load %arg2[%c0, %c0_0] : memref<8x32xf32, #tpu.memory_space<vmem>>, vector<8x32xf32>
    %c0_1 = arith.constant 0 : index
    %c0_2 = arith.constant 0 : index
    %c0_3 = arith.constant 0 : index
    %1 = vector.load %arg1[%c0_1, %c0_2, %c0_3] : memref<1x32x336xf32, #tpu.memory_space<vmem>>, vector<1x32x336xf32>
    %2 = vector.shape_cast %1 : vector<1x32x336xf32> to vector<32x336xf32>
    %cst = arith.constant dense<0.000000e+00> : vector<8x336xf32>
    %3 = tpu.matmul %0, %2, %cst {dimension_numbers = #tpu.dot_dimension_numbers<[1], [0], [0], [1], [0, 0, 1, 1], [], []>} : vector<8x32xf32>, vector<32x336xf32>, vector<8x336xf32> -> vector<8x336xf32>
    %c0_4 = arith.constant 0 : index
    %c0_5 = arith.constant 0 : index
    %4 = vector.load %arg3[%c0_4, %c0_5] : memref<8x1xf32, #tpu.memory_space<vmem>>, vector<8x1xf32>
    %5 = vector.broadcast %4 : vector<8x1xf32> to vector<8x336xf32>
    %6 = arith.addf %3, %5 : vector<8x336xf32>
    %c0_6 = arith.constant 0 : index
    %c0_7 = arith.constant 0 : index
    %c0_8 = arith.constant 0 : index
    %7 = vector.load %arg4[%c0_6, %c0_7, %c0_8] : memref<1x8x336xf32, #tpu.memory_space<vmem>>, vector<1x8x336xf32>
    %8 = vector.shape_cast %7 : vector<1x8x336xf32> to vector<8x336xf32>
    %9 = vector.shape_cast %6 : vector<8x336xf32> to vector<1x8x336xf32>
    tpu.vector_store %arg4[%c0_6, %c0_7, %c0_8], %9 {strides = array<i32>} : memref<1x8x336xf32, #tpu.memory_space<vmem>>, vector<1x8x336xf32>,
    return
  }
  func.func @transform_0(%arg0: i32) -> (i32, i32, i32) {
    %c0_i32 = arith.constant 0 : i32
    %c0_i32_0 = arith.constant 0 : i32
    %c0_i32_1 = arith.constant 0 : i32
    return %arg0, %c0_i32, %c0_i32_0 : i32, i32, i32
  }
  func.func @transform_1(%arg0: i32) -> (i32, i32) {
    %c0_i32 = arith.constant 0 : i32
    %c0_i32_0 = arith.constant 0 : i32
    %c0_i32_1 = arith.constant 0 : i32
    return %c0_i32, %c0_i32_0 : i32, i32
  }
  func.func @transform_2(%arg0: i32) -> (i32, i32) {
    %c0_i32 = arith.constant 0 : i32
    %c0_i32_0 = arith.constant 0 : i32
    %c0_i32_1 = arith.constant 0 : i32
    return %c0_i32, %c0_i32_0 : i32, i32
  }
  func.func @transform_3(%arg0: i32) -> (i32, i32, i32) {
    %c0_i32 = arith.constant 0 : i32
    %c0_i32_0 = arith.constant 0 : i32
    %c0_i32_1 = arith.constant 0 : i32
    return %arg0, %c0_i32, %c0_i32_0 : i32, i32, i32
  }
}

</mosaic_0001>

<llo_original>
// kernel: _forward_fused.1
$region0: #{_forward_fused.1}
  #allocation0 [shape = 'u32[]', space=smem, size = 0x4, offset = 0x4, fixed_abs, tag = 'smem constant byte address 0x4 - core index']
  #allocation1 [shape = 'u32[144,128]{1,0:T(1,128)}', space=vmem, size = 0x12000, scoped, tag = 'internal scratch']
  %s0 = inlined_call_operand.vmem [shape: f32[2,32,336], index: 0, kind: input, shape index: {}]
  %s1 = inlined_call_operand.vmem [shape: f32[8,32], index: 1, kind: input, shape index: {}]
  %s2 = inlined_call_operand.vmem [shape: f32[8,1], index: 2, kind: input, shape index: {}]
  %s3 = inlined_call_operand.vmem [shape: f32[2,8,336], index: 3, kind: output, shape index: {}]
  %s4 = sld [smem:[#allocation0]]
  $region45: #{_forward_fused.1} parent=0
    _
  %s6 = ssub.s32 1, %s4
  %s7 = scalar_select 0, %s6, %s4
  loop: start=0, step=1, limit=4
  $region2: #{_forward_fused.1} parent=0 // loop_pre_header
    _
  $region3: #{_forward_fused.1} parent=0 // loop_header
    %s9 = sphi 0, %s13
    %p10 = scmp.ge.s32.totalorder %s9, 4
    %s19 = sphi 0, %s21
    %s22 = sphi 0, %s19
    %s23 = sphi 0, %s22
    %s39 = sphi 0, %s23
    %s43 = sphi 0, %s43
    %s45 = sphi 0, %s43
    %s46 = sphi 0, %s45
    %s60 = sphi 0, %s46
    %s64 = sphi 0, %s64
    %s66 = sphi 0, %s64
    %s67 = sphi 0, %s66
    %s81 = sphi 0, %s67
    %s87 = sphi 0, %s89
    %s90 = sphi 0, %s87
    %s91 = sphi 0, %s90
    %s107 = sphi 0, %s91
  $region4: #{_forward_fused.1} parent=0 // loop_header_branch
    %12 = sbr.rel (%p10) target = $region8
  $region5: #{_forward_fused.1} parent=0 // loop_body
    %s14 = ssub.s32 %s9, 1
    %s15 = ssub.s32 %s9, 2
    %s16 = sadd.s32 %s9, 1
    %s17 = ssub.s32 %s9, %s16
    %p18 = scmp.eq.s32.totalorder %s17, 0
    %s20 = sadd.s32 %s19, 1
    %s21 = scalar_select %p18, %s19, %s20
    %p24 = pneg %p18
    %p25 = scmp.eq.s32.totalorder %s9, 1
    %p26 = por %p24, %p25
    %p27 = scmp.ne.s32.totalorder %s19, %s22
    %p28 = scmp.eq.s32.totalorder %s9, 0
    %p29 = por %p27, %p28
    %p30 = scmp.ne.s32.totalorder %s19, %s22
    %p31 = scmp.eq.s32.totalorder %s14, 1
    %p32 = por %p30, %p31
    %p33 = scmp.ne.s32.totalorder %s22, %s23
    %p34 = scmp.eq.s32.totalorder %s14, 0
    %p35 = por %p33, %p34
    %p36 = scmp.ne.s32.totalorder %s22, %s23
    %p37 = scmp.eq.s32.totalorder %s15, 1
    %p38 = por %p36, %p37
    %p40 = scmp.ne.s32.totalorder %s23, %s39
    %p41 = scmp.eq.s32.totalorder %s15, 0
    %p42 = por %p40, %p41
    %s44 = sadd.s32 %s43, 1
    %p47 = scmp.eq.s32.totalorder %s9, 1
    %p48 = scmp.ne.s32.totalorder %s43, %s45
    %p49 = scmp.eq.s32.totalorder %s9, 0
    %p50 = por %p48, %p49
    %p51 = scmp.ne.s32.totalorder %s43, %s45
    %p52 = scmp.eq.s32.totalorder %s14, 1
    %p53 = por %p51, %p52
    %p54 = scmp.ne.s32.totalorder %s45, %s46
    %p55 = scmp.eq.s32.totalorder %s14, 0
    %p56 = por %p54, %p55
    %p57 = scmp.ne.s32.totalorder %s45, %s46
    %p58 = scmp.eq.s32.totalorder %s15, 1
    %p59 = por %p57, %p58
    %p61 = scmp.ne.s32.totalorder %s46, %s60
    %p62 = scmp.eq.s32.totalorder %s15, 0
    %p63 = por %p61, %p62
    %s65 = sadd.s32 %s64, 1
    %p68 = scmp.eq.s32.totalorder %s9, 1
    %p69 = scmp.ne.s32.totalorder %s64, %s66
    %p70 = scmp.eq.s32.totalorder %s9, 0
    %p71 = por %p69, %p70
    %p72 = scmp.ne.s32.totalorder %s64, %s66
    %p73 = scmp.eq.s32.totalorder %s14, 1
    %p74 = por %p72, %p73
    %p75 = scmp.ne.s32.totalorder %s66, %s67
    %p76 = scmp.eq.s32.totalorder %s14, 0
    %p77 = por %p75, %p76
    %p78 = scmp.ne.s32.totalorder %s66, %s67
    %p79 = scmp.eq.s32.totalorder %s15, 1
    %p80 = por %p78, %p79
    %p82 = scmp.ne.s32.totalorder %s67, %s81
    %p83 = scmp.eq.s32.totalorder %s15, 0
    %p84 = por %p82, %p83
    %s85 = ssub.s32 %s9, %s16
    %p86 = scmp.eq.s32.totalorder %s85, 0
    %s88 = sadd.s32 %s87, 1
    %s89 = scalar_select %p86, %s87, %s88
    %p92 = pneg %p86
    %p93 = scmp.eq.s32.totalorder %s9, 1
    %p94 = por %p92, %p93
    %p95 = scmp.ne.s32.totalorder %s87, %s90
    %p96 = scmp.eq.s32.totalorder %s9, 0
    %p97 = por %p95, %p96
    %p98 = scmp.ne.s32.totalorder %s87, %s90
    %p99 = scmp.eq.s32.totalorder %s14, 1
    %p100 = por %p98, %p99
    %p101 = scmp.ne.s32.totalorder %s90, %s91
    %p102 = scmp.eq.s32.totalorder %s14, 0
    %p103 = por %p101, %p102
    %p104 = scmp.ne.s32.totalorder %s90, %s91
    %p105 = scmp.eq.s32.totalorder %s15, 1
    %p106 = por %p104, %p105
    %p108 = scmp.ne.s32.totalorder %s91, %s107
    %p109 = scmp.eq.s32.totalorder %s15, 0
    %p110 = por %p108, %p109
    %p111 = scmp.le.s32.totalorder 1, %s9
    %p112 = scmp.lt.s32.totalorder %s9, 3
    %p113 = pnand %p111, %p112
    %p114 = pneg %p113
    // Predicated region
    $region9: #{_forward_fused.1} parent=5 // pred_check
      _
    $region10: #{_forward_fused.1} parent=5 // pred_check_branch
      %116 = sbr.rel (%p113) target = $region12
    $region11: #{_forward_fused.1} parent=5 // pred_region
      %s117 = ssub.s32 %s9, 1
      // Predicated region
      $region13: #{_forward_fused.1} parent=11 // pred_check
        %p118 = pneg %p56
      $region14: #{_forward_fused.1} parent=11 // pred_check_branch
        %120 = sbr.rel (%p118) target = $region16
      $region15: #{_forward_fused.1} parent=11 // pred_region
        _
      $region16: #{_forward_fused.1} parent=11 // pred_fallthru
        _
      // Predicated region
      $region17: #{_forward_fused.1} parent=11 // pred_check
        %p121 = pneg %p77
      $region18: #{_forward_fused.1} parent=11 // pred_check_branch
        %123 = sbr.rel (%p121) target = $region20
      $region19: #{_forward_fused.1} parent=11 // pred_region
        _
      $region20: #{_forward_fused.1} parent=11 // pred_fallthru
        _
    $region12: #{_forward_fused.1} parent=5 // pred_fallthru
      _
    %p124 = scmp.lt.s32.totalorder %s9, 2
    // Predicated region
    $region21: #{_forward_fused.1} parent=5 // pred_check
      %p125 = pneg %p124
    $region22: #{_forward_fused.1} parent=5 // pred_check_branch
      %127 = sbr.rel (%p125) target = $region24
    $region23: #{_forward_fused.1} parent=5 // pred_region
      // Predicated region
      $region25: #{_forward_fused.1} parent=23 // pred_check
        %p128 = pneg %p29
      $region26: #{_forward_fused.1} parent=23 // pred_check_branch
        %130 = sbr.rel (%p128) target = $region28
      $region27: #{_forward_fused.1} parent=23 // pred_region
        %p131 = scmp.lt.s32.totalorder %s9, 1
        %s132 = scalar_select %p131, %s9, 1
        %s133 = smul.addr %s132, 12
        %s134 = smul.addr %s133, 8
        %s135 = scalar_lea.vmem %s0, %s134
      $region28: #{_forward_fused.1} parent=23 // pred_fallthru
        _
    $region24: #{_forward_fused.1} parent=5 // pred_fallthru
      _
    %p136 = scmp.le.s32.totalorder 1, %s9
    %p137 = scmp.lt.s32.totalorder %s9, 3
    %p138 = pnand %p136, %p137
    %p139 = pneg %p138
    // Predicated region
    $region29: #{_forward_fused.1} parent=5 // pred_check
      _
    $region30: #{_forward_fused.1} parent=5 // pred_check_branch
      %141 = sbr.rel (%p138) target = $region32
    $region31: #{_forward_fused.1} parent=5 // pred_region
      %s142 = ssub.s32 %s9, 1
      %p143 = scmp.lt.s32.totalorder %s14, 1
      %s144 = scalar_select %p143, %s14, 1
      %s145 = smul.addr %s144, 12
      %s146 = smul.addr %s145, 8
      %s147 = scalar_lea.vmem %s0, %s146
      %p148 = pneg %p35
      %p149 = pneg %p32
      %p150 = pneg %p56
      %p151 = pneg %p53
      %p152 = pneg %p77
      %p153 = pneg %p74
      %p154 = pneg %p103
      %p155 = pneg %p100
      %p156 = scmp.lt.s32.totalorder %s14, 1
      %s157 = scalar_select %p156, %s14, 1
      %s158 = smul.addr %s157, 3
      %s159 = smul.addr %s158, 8
      %s160 = scalar_lea.vmem %s3, %s159
      %p161 = scmp.lt.s32.totalorder %s14, 1
      %s162 = scalar_select %p161, %s14, 1
      %s163 = smul.addr %s162, 12
      %s164 = smul.addr %s163, 8
      %s165 = scalar_lea.vmem %s0, %s164
      %p166 = scmp.lt.s32.totalorder %s14, 1
      %s167 = scalar_select %p166, %s14, 1
      %s168 = smul.addr %s167, 3
      %s169 = smul.addr %s168, 8
      %s170 = scalar_lea.vmem %s3, %s169
      %v171 = vld [vmem:[%s1] sm:$0xff]
      %v172 = vld [vmem:[%s165] sm:$0xff]
      %v173 = vld [vmem:[%s165 + $0x8] sm:$0xff]
      %v174 = vld [vmem:[%s165 + $0x10] sm:$0xff]
      %v175 = vld [vmem:[%s165 + $0x18] sm:$0xff]
      %v176 = vld [vmem:[%s165 + $0x20] sm:$0xff]
      %v177 = vld [vmem:[%s165 + $0x28] sm:$0xff]
      %v178 = vld [vmem:[%s165 + $0x30] sm:$0xff]
      %v179 = vld [vmem:[%s165 + $0x38] sm:$0xff]
      %v180 = vld [vmem:[%s165 + $0x40] sm:$0xff]
      %v181 = vld [vmem:[%s165 + $0x48] sm:$0xff]
      %v182 = vld [vmem:[%s165 + $0x50] sm:$0xff]
      %v183 = vld [vmem:[%s165 + $0x58] sm:$0xff]
      %v184 = vld [vmem:[%s2] sm:$0xff]
      %186 = vset.pattern.permute.xlu0 0
      %187 = vperm.xlu0 %186, %v184
      %v188 = vpop.permute.xlu0 %187
      %vm190 = vcmask 261120
      %v192 = vsel %vm190, %v171, 0
      %194 = vmatprep.subr.mxu0 %v173
      %195 = vmatpush1.msra.mxu0 %v172
      %196 = vmatprep.subr.mxu0 %v176
      %197 = vmatpush1.msra.mxu0 %v175
      %198 = vmatprep.subr.mxu0 %v179
      %199 = vmatpush1.msra.mxu0 %v178
      %200 = vmatprep.subr.mxu0 %v182
      %201 = vmatpush1.msra.mxu0 %v181
      %202 = vmatprep.subr.mxu0 0.0
      %203 = vmatpush1.msra.mxu0 0.0
      %204 = vmatprep.subr.mxu0 0.0
      %205 = vmatpush1.msra.mxu0 0.0
      %206 = vmatprep.subr.mxu0 0.0
      %207 = vmatpush1.msra.mxu0 0.0
      %208 = vmatprep.subr.mxu0 0.0
      %209 = vmatpush1.msra.mxu0 0.0
      %210 = vmatprep.subr.mxu0 0.0
      %211 = vmatpush1.msra.mxu0 0.0
      %212 = vmatprep.subr.mxu0 0.0
      %213 = vmatpush1.msra.mxu0 0.0
      %214 = vmatprep.subr.mxu0 0.0
      %215 = vmatpush1.msra.mxu0 0.0
      %216 = vmatprep.subr.mxu0 0.0
      %217 = vmatpush1.msra.mxu0 0.0
      %218 = vmatprep.subr.mxu0 0.0
      %219 = vmatpush1.msra.mxu0 0.0
      %220 = vmatprep.subr.mxu0 0.0
      %221 = vmatpush1.msra.mxu0 0.0
      %222 = vmatprep.subr.mxu0 0.0
      %223 = vmatpush1.msra.mxu0 0.0
      %224 = vmatprep.subr.mxu0 0.0
      %225 = vmatpush1.msra.mxu0 0.0
      %226 = vmatprep.subr.mxu0 0.0
      %227 = vmatpush1.msra.mxu0 0.0
      %228 = vmatprep.subr.mxu0 0.0
      %229 = vmatpush1.msra.mxu0 0.0
      %230 = vmatprep.subr.mxu0 0.0
      %231 = vmatpush1.msra.mxu0 0.0
      %232 = vmatprep.subr.mxu0 0.0
      %233 = vmatpush1.msra.mxu0 0.0
      %234 = vmatprep.subr.mxu0 0.0
      %235 = vmatpush1.msra.mxu0 0.0
      %236 = vmatprep.subr.mxu0 0.0
      %237 = vmatpush1.msra.mxu0 0.0
      %238 = vmatprep.subr.mxu0 0.0
      %239 = vmatpush1.msra.mxu0 0.0
      %240 = vmatprep.subr.mxu0 0.0
      %241 = vmatpush1.msra.mxu0 0.0
      %242 = vmatprep.subr.mxu0 0.0
      %243 = vmatpush1.msra.mxu0 0.0
      %244 = vmatprep.subr.mxu0 0.0
      %245 = vmatpush1.msra.mxu0 0.0
      %246 = vmatprep.subr.mxu0 0.0
      %247 = vmatpush1.msra.mxu0 0.0
      %248 = vmatprep.subr.mxu0 0.0
      %249 = vmatpush1.msra.mxu0 0.0
      %250 = vmatprep.subr.mxu0 0.0
      %251 = vmatpush1.msra.mxu0 0.0
      %252 = vmatprep.subr.mxu0 0.0
      %253 = vmatpush1.msra.mxu0 0.0
      %254 = vmatprep.subr.mxu0 0.0
      %255 = vmatpush1.msra.mxu0 0.0
      %256 = vmatprep.subr.mxu0 0.0
      %257 = vmatpush1.msra.mxu0 0.0
      %258 = vmatprep.mubr.f32.mxu0 0.0
      %259 = vmatmul.mubr.f32.gmra.mrb[0].mxu0 %v192
      %v260 = vpop.f32.mrb[0].mxu0
      %v261 = vadd.f32 %v188, %v260
      %v262 = vpop.f32.mrb[0].mxu0
      %v263 = vadd.f32 %v188, %v262
      %264 = vdwg.mxu0
      %265 = vmatprep.subr.mxu0 0.0
      %266 = vmatpush1.msra.mxu0 %v174
      %267 = vmatprep.subr.mxu0 0.0
      %268 = vmatpush1.msra.mxu0 %v177
      %269 = vmatprep.subr.mxu0 0.0
      %270 = vmatpush1.msra.mxu0 %v180
      %271 = vmatprep.subr.mxu0 0.0
      %272 = vmatpush1.msra.mxu0 %v183
      %273 = vmatprep.subr.mxu0 0.0
      %274 = vmatpush1.msra.mxu0 0.0
      %275 = vmatprep.subr.mxu0 0.0
      %276 = vmatpush1.msra.mxu0 0.0
      %277 = vmatprep.subr.mxu0 0.0
      %278 = vmatpush1.msra.mxu0 0.0
      %279 = vmatprep.subr.mxu0 0.0
      %280 = vmatpush1.msra.mxu0 0.0
      %281 = vmatprep.subr.mxu0 0.0
      %282 = vmatpush1.msra.mxu0 0.0
      %283 = vmatprep.subr.mxu0 0.0
      %284 = vmatpush1.msra.mxu0 0.0
      %285 = vmatprep.subr.mxu0 0.0
      %286 = vmatpush1.msra.mxu0 0.0
      %287 = vmatprep.subr.mxu0 0.0
      %288 = vmatpush1.msra.mxu0 0.0
      %289 = vmatprep.subr.mxu0 0.0
      %290 = vmatpush1.msra.mxu0 0.0
      %291 = vmatprep.subr.mxu0 0.0
      %292 = vmatpush1.msra.mxu0 0.0
      %293 = vmatprep.subr.mxu0 0.0
      %294 = vmatpush1.msra.mxu0 0.0
      %295 = vmatprep.subr.mxu0 0.0
      %296 = vmatpush1.msra.mxu0 0.0
      %297 = vmatprep.subr.mxu0 0.0
      %298 = vmatpush1.msra.mxu0 0.0
      %299 = vmatprep.subr.mxu0 0.0
      %300 = vmatpush1.msra.mxu0 0.0
      %301 = vmatprep.subr.mxu0 0.0
      %302 = vmatpush1.msra.mxu0 0.0
      %303 = vmatprep.subr.mxu0 0.0
      %304 = vmatpush1.msra.mxu0 0.0
      %305 = vmatprep.subr.mxu0 0.0
      %306 = vmatpush1.msra.mxu0 0.0
      %307 = vmatprep.subr.mxu0 0.0
      %308 = vmatpush1.msra.mxu0 0.0
      %309 = vmatprep.subr.mxu0 0.0
      %310 = vmatpush1.msra.mxu0 0.0
      %311 = vmatprep.subr.mxu0 0.0
      %312 = vmatpush1.msra.mxu0 0.0
      %313 = vmatprep.subr.mxu0 0.0
      %314 = vmatpush1.msra.mxu0 0.0
      %315 = vmatprep.subr.mxu0 0.0
      %316 = vmatpush1.msra.mxu0 0.0
      %317 = vmatprep.subr.mxu0 0.0
      %318 = vmatpush1.msra.mxu0 0.0
      %319 = vmatprep.subr.mxu0 0.0
      %320 = vmatpush1.msra.mxu0 0.0
      %321 = vmatprep.subr.mxu0 0.0
      %322 = vmatpush1.msra.mxu0 0.0
      %323 = vmatprep.subr.mxu0 0.0
      %324 = vmatpush1.msra.mxu0 0.0
      %325 = vmatprep.subr.mxu0 0.0
      %326 = vmatpush1.msra.mxu0 0.0
      %327 = vmatprep.subr.mxu0 0.0
      %328 = vmatpush1.msra.mxu0 0.0
      %329 = vmatprep.mubr.f32.mxu0 0.0
      %330 = vmatmul.mubr.f32.gmra.mrb[0].mxu0 %v192
      %v331 = vpop.f32.mrb[0].mxu0
      %v332 = vadd.f32 %v188, %v331
      %v333 = vpop.f32.mrb[0].mxu0
      %334 = vdwg.mxu0
      %335 = vst [vmem:[%s170] sm:$0xff] %v261
      %336 = vst [vmem:[%s170 + $0x8] sm:$0xff] %v263
      %vm337 = vcmask 654336
      %338 = vst.msk [vmem:[%s170 + $0x10] sm:$0xff] %vm337, %v332
      %p339 = scmp.lt.s32.totalorder %s14, 1
      %s340 = scalar_select %p339, %s14, 1
      %s341 = smul.addr %s340, 3
      %s342 = smul.addr %s341, 8
      %s343 = scalar_lea.vmem %s3, %s342
      // Predicated region
      $region33: #{_forward_fused.1} parent=31 // pred_check
        %p344 = pneg %p100
      $region34: #{_forward_fused.1} parent=31 // pred_check_branch
        %346 = sbr.rel (%p344) target = $region36
      $region35: #{_forward_fused.1} parent=31 // pred_region
        _
      $region36: #{_forward_fused.1} parent=31 // pred_fallthru
        _
    $region32: #{_forward_fused.1} parent=5 // pred_fallthru
      _
    %p347 = scmp.le.s32.totalorder 2, %s9
    // Predicated region
    $region37: #{_forward_fused.1} parent=5 // pred_check
      %p348 = pneg %p347
    $region38: #{_forward_fused.1} parent=5 // pred_check_branch
      %350 = sbr.rel (%p348) target = $region40
    $region39: #{_forward_fused.1} parent=5 // pred_region
      %s351 = ssub.s32 %s9, 2
      // Predicated region
      $region41: #{_forward_fused.1} parent=39 // pred_check
        %p352 = pneg %p106
      $region42: #{_forward_fused.1} parent=39 // pred_check_branch
        %354 = sbr.rel (%p352) target = $region44
      $region43: #{_forward_fused.1} parent=39 // pred_region
        %p355 = scmp.lt.s32.totalorder %s15, 1
        %s356 = scalar_select %p355, %s15, 1
        %s357 = smul.addr %s356, 3
        %s358 = smul.addr %s357, 8
        %s359 = scalar_lea.vmem %s3, %s358
      $region44: #{_forward_fused.1} parent=39 // pred_fallthru
        _
    $region40: #{_forward_fused.1} parent=5 // pred_fallthru
      _
  $region6: #{_forward_fused.1} parent=0 // loop_footer
    %s13 = sadd.s32 1, %s9
  $region7: #{_forward_fused.1} parent=0 // loop_footer_branch
    %8 = sbr.rel target = $region3
  $region8: #{_forward_fused.1} parent=0 // loop_exit
    _

</llo_original>
